<compile_context>
chip_gen: v5e
topology: v5e:2x2
jax: 0.10.0
libtpu: 0.0.40
codegen_flags: <defaults>
</compile_context>

<pallas_src>
import functools

import jax
import jax.numpy as jnp
from jax import lax
from jax.experimental import pallas as pl
from jax.experimental.pallas import tpu as pltpu


def _kmeans_fwd_kernel(x_ref, mT_ref, msq_ref, dists_ref, part_ref, *, seq_len):
    # x_ref    : (1, 1, tL, D)   native (B, H, L, D) tile
    # mT_ref   : (1, D, C)       means[h]^T  (pre-transposed MXU RHS)
    # msq_ref  : (1, 1, C)       per-cluster ||means[h, c]||^2 (f32)
    # dists_ref: (1, 1, tL, C)   native (B, H, L, C) tile
    # part_ref : (1, 1, 1, 128)  per-(b, h) loss partial, accumulated over L tiles
    l_step = pl.program_id(2)

    x_in = x_ref[0, 0, :, :]                                 # (tL, D), native dtype
    xf = x_in.astype(jnp.float32)

    # F.normalize(x, 2, dim=-1) with eps=1e-12  ==  x * rsqrt(max(sum x^2, eps^2))
    sumsq = jnp.sum(xf * xf, axis=-1, keepdims=True)          # (tL, 1)
    inv = lax.rsqrt(jnp.maximum(sumsq, 1e-24))                # EUP rsqrt
    xn = xf * inv                                             # (tL, D) f32

    # dists tile = xn @ means[h].T — MXU fed in the input dtype, f32 accumulate.
    dists = jnp.dot(xn.astype(x_in.dtype), mT_ref[0, :, :],
                    preferred_element_type=jnp.float32)       # (tL, C)
    dists_ref[0, 0, :, :] = dists.astype(dists_ref.dtype)

    # Loss via ||xn - m_b||^2 = ||xn||^2 - 2*max_c dists + ||m_b||^2.
    tL, C = dists.shape
    max_d = jnp.max(dists, axis=-1, keepdims=True)            # (tL, 1)

    # first-max (torch.max tie-break) cluster index via int32 masked-iota min,
    # then select that cluster's squared norm.
    iota_c = lax.broadcasted_iota(jnp.int32, (tL, C), 1)
    first_max = jnp.min(jnp.where(dists >= max_d, iota_c, C),
                        axis=-1, keepdims=True)               # (tL, 1)
    bucket_msq = jnp.sum(
        jnp.where(iota_c == first_max, msq_ref[0, :, :].astype(jnp.float32), 0.0),
        axis=-1, keepdims=True)                               # (tL, 1)

    xn_sq = sumsq * inv * inv                                 # ||xn||^2 (eps-clamp safe)
    sq_err = xn_sq - 2.0 * max_d + bucket_msq                 # (tL, 1)

    # Mask rows past seq_len so padded tail tiles never leak into the loss.
    row = l_step * tL + lax.broadcasted_iota(jnp.int32, (tL, 1), 0)
    total = jnp.sum(jnp.where(row < seq_len, sq_err, 0.0))

    # Race-free accumulator: each (b, h) owns its own resident output block;
    # only the innermost ("arbitrary") L axis revisits it.
    @pl.when(l_step == 0)
    def _():
        part_ref[...] = jnp.zeros_like(part_ref)
    part_ref[...] += total


def kmeans_forward(x, means, commitment=10.0, tile_l=512):
    B, H, L, D = x.shape
    Hm, C, Dm = means.shape
    assert H == Hm and D == Dm

    # L tile: whole L if small, else a sublane-friendly streaming tile.
    tL = L if L <= tile_l else tile_l
    assert tL == L or tL % 8 == 0
    nL = pl.cdiv(L, tL)

    # Tiny wrapper-side prep (H*D*C elements only): MXU-ready RHS + cluster norms.
    mT = jnp.transpose(means, (0, 2, 1))                                   # (H, D, C)
    msq = jnp.sum(means.astype(jnp.float32) ** 2, axis=-1)[:, None, :]     # (H, 1, C)

    kernel = functools.partial(_kmeans_fwd_kernel, seq_len=L)
    dists, partials = pl.pallas_call(
        kernel,
        out_shape=(
            jax.ShapeDtypeStruct((B, H, L, C), x.dtype),
            jax.ShapeDtypeStruct((B, H, 1, 128), jnp.float32),
        ),
        grid=(B, H, nL),
        in_specs=[
            pl.BlockSpec((1, 1, tL, D), lambda b, h, l: (b, h, l, 0)),
            pl.BlockSpec((1, D, C), lambda b, h, l: (h, 0, 0)),
            pl.BlockSpec((1, 1, C), lambda b, h, l: (h, 0, 0)),
        ],
        out_specs=(
            pl.BlockSpec((1, 1, tL, C), lambda b, h, l: (b, h, l, 0)),
            pl.BlockSpec((1, 1, 1, 128), lambda b, h, l: (b, h, 0, 0)),
        ),
        compiler_params=pltpu.CompilerParams(
            dimension_semantics=("parallel", "parallel", "arbitrary")),
    )(x, mT, msq)

    sqsum = jnp.sum(partials[:, :, 0, 0])
    mse = sqsum / jnp.float32(B * H * L * D)
    loss = (mse * jnp.float32(commitment)).astype(x.dtype)
    return dists, loss


def kmeans_forward_ref(x, means, commitment=10.0):
    """Pure-JAX reference mirroring the PyTorch module."""
    norm = jnp.linalg.norm(x, axis=-1, keepdims=True)
    xn = x / jnp.maximum(norm, 1e-12)
    dists = jnp.einsum('bhld,hcd->bhlc', xn, means,
                       precision=lax.Precision.HIGHEST)
    buckets = jnp.argmax(dists, axis=-1)                        # (B, H, L)
    means_b = jnp.broadcast_to(means[None], (x.shape[0],) + means.shape)
    routed = jnp.take_along_axis(means_b, buckets[..., None], axis=2)
    loss = jnp.mean((xn - routed) ** 2) * commitment
    return dists, loss


if __name__ == "__main__":
    # module hyper-params (small, consistent with the forward):
    B, H, L, D = 2, 4, 16, 32        # batch, num_heads, seq, head_dim
    C = 8                            # rep_frames
    COMMITMENT = 10.0

    key = jax.random.PRNGKey(0)
    kx, km = jax.random.split(key)
    x = jax.random.normal(kx, (B, H, L, D), dtype=jnp.float32)
    # register_buffer('means', torch.randn(num_heads, rep_frames, head_dim))
    means = jax.random.normal(km, (H, C, D), dtype=jnp.float32)

    dists, loss = kmeans_forward(x, means, COMMITMENT)
    jax.block_until_ready((dists, loss))

    dists_ref, loss_ref = kmeans_forward_ref(x, means, COMMITMENT)
    assert dists.shape == (B, H, L, C)
    assert jnp.allclose(dists, dists_ref, rtol=1e-3, atol=1e-3)
    assert jnp.allclose(loss, loss_ref, rtol=1e-3, atol=1e-3)

    print("KERNEL_OK")
</pallas_src>

<mosaic_0001>
module attributes {stable_mosaic.version = 11 : i64} {
  func.func @_kmeans_fwd_kernel(%arg0: i32, %arg1: i32, %arg2: i32, %arg3: memref<1x1x16x32xf32, #tpu.memory_space<vmem>>, %arg4: memref<1x32x8xf32, #tpu.memory_space<vmem>>, %arg5: memref<1x1x8xf32, #tpu.memory_space<vmem>>, %arg6: memref<1x1x16x8xf32, #tpu.memory_space<vmem>>, %arg7: memref<1x1x1x128xf32, #tpu.memory_space<vmem>>) attributes {dimension_semantics = [#tpu.dimension_semantics<parallel>, #tpu.dimension_semantics<parallel>, #tpu.dimension_semantics<arbitrary>], iteration_bounds = array<i64: 2, 4, 1>, scalar_prefetch = 0 : i64, scratch_operands = 0 : i64, tpu.core_type = #tpu.core_type<tc>, window_params = [{transform_indices = @transform_0, window_bounds = array<i64: 1, 1, 16, 32>}, {transform_indices = @transform_1, window_bounds = array<i64: 1, 32, 8>}, {transform_indices = @transform_2, window_bounds = array<i64: 1, 1, 8>}, {transform_indices = @transform_3, window_bounds = array<i64: 1, 1, 16, 8>}, {transform_indices = @transform_4, window_bounds = array<i64: 1, 1, 1, 128>}]} {
    %c0 = arith.constant 0 : index
    %c0_0 = arith.constant 0 : index
    %c0_1 = arith.constant 0 : index
    %c0_2 = arith.constant 0 : index
    %0 = vector.load %arg3[%c0, %c0_0, %c0_1, %c0_2] : memref<1x1x16x32xf32, #tpu.memory_space<vmem>>, vector<1x1x16x32xf32>
    %1 = vector.shape_cast %0 : vector<1x1x16x32xf32> to vector<16x32xf32>
    %2 = arith.mulf %1, %1 : vector<16x32xf32>
    %cst = arith.constant dense<0.000000e+00> : vector<16xf32>
    %3 = vector.multi_reduction <add>, %2, %cst [1] : vector<16x32xf32> to vector<16xf32>
    %4 = vector.shape_cast %3 : vector<16xf32> to vector<16x1xf32>
    %cst_3 = arith.constant 1.000000e-24 : f32
    %5 = vector.broadcast %cst_3 : f32 to vector<16x1xf32>
    %6 = arith.maximumf %4, %5 : vector<16x1xf32>
    %7 = math.rsqrt %6 : vector<16x1xf32>
    %8 = vector.broadcast %7 : vector<16x1xf32> to vector<16x32xf32>
    %9 = arith.mulf %1, %8 : vector<16x32xf32>
    %c0_4 = arith.constant 0 : index
    %c0_5 = arith.constant 0 : index
    %c0_6 = arith.constant 0 : index
    %10 = vector.load %arg4[%c0_4, %c0_5, %c0_6] : memref<1x32x8xf32, #tpu.memory_space<vmem>>, vector<1x32x8xf32>
    %11 = vector.shape_cast %10 : vector<1x32x8xf32> to vector<32x8xf32>
    %cst_7 = arith.constant dense<0.000000e+00> : vector<16x8xf32>
    %12 = tpu.matmul %9, %11, %cst_7 {dimension_numbers = #tpu.dot_dimension_numbers<[1], [0], [0], [1], [0, 0, 1, 1], [], []>} : vector<16x32xf32>, vector<32x8xf32>, vector<16x8xf32> -> vector<16x8xf32>
    %c0_8 = arith.constant 0 : index
    %c0_9 = arith.constant 0 : index
    %c0_10 = arith.constant 0 : index
    %c0_11 = arith.constant 0 : index
    %13 = vector.load %arg6[%c0_8, %c0_9, %c0_10, %c0_11] : memref<1x1x16x8xf32, #tpu.memory_space<vmem>>, vector<1x1x16x8xf32>
    %14 = vector.shape_cast %13 : vector<1x1x16x8xf32> to vector<16x8xf32>
    %15 = vector.shape_cast %12 : vector<16x8xf32> to vector<1x1x16x8xf32>
    tpu.vector_store %arg6[%c0_8, %c0_9, %c0_10, %c0_11], %15 {strides = array<i32>} : memref<1x1x16x8xf32, #tpu.memory_space<vmem>>, vector<1x1x16x8xf32>,
    %cst_12 = arith.constant dense<0xFF800000> : vector<16xf32>
    %16 = vector.multi_reduction <maximumf>, %12, %cst_12 [1] : vector<16x8xf32> to vector<16xf32>
    %17 = vector.shape_cast %16 : vector<16xf32> to vector<16x1xf32>
    %18 = tpu.iota {dimensions = array<i32: 1>} : vector<16x8xi32>
    %19 = vector.broadcast %17 : vector<16x1xf32> to vector<16x8xf32>
    %20 = arith.cmpf oge, %12, %19 : vector<16x8xf32>
    %c8_i32 = arith.constant 8 : i32
    %21 = vector.broadcast %c8_i32 : i32 to vector<16x8xi32>
    %22 = arith.select %20, %18, %21 : vector<16x8xi1>, vector<16x8xi32>
    %cst_13 = arith.constant dense<2147483647> : vector<16xi32>
    %23 = vector.multi_reduction <minsi>, %22, %cst_13 [1] : vector<16x8xi32> to vector<16xi32>
    %24 = vector.shape_cast %23 : vector<16xi32> to vector<16x1xi32>
    %25 = vector.broadcast %24 : vector<16x1xi32> to vector<16x8xi32>
    %26 = arith.cmpi eq, %18, %25 : vector<16x8xi32>
    %c0_14 = arith.constant 0 : index
    %c0_15 = arith.constant 0 : index
    %c0_16 = arith.constant 0 : index
    %27 = vector.load %arg5[%c0_14, %c0_15, %c0_16] : memref<1x1x8xf32, #tpu.memory_space<vmem>>, vector<1x1x8xf32>
    %28 = vector.shape_cast %27 : vector<1x1x8xf32> to vector<1x8xf32>
    %cst_17 = arith.constant 0.000000e+00 : f32
    %29 = vector.shape_cast %28 : vector<1x8xf32> to vector<1x8xf32>
    %30 = vector.broadcast %29 : vector<1x8xf32> to vector<16x8xf32>
    %31 = vector.broadcast %cst_17 : f32 to vector<16x8xf32>
    %32 = arith.select %26, %30, %31 : vector<16x8xi1>, vector<16x8xf32>
    %cst_18 = arith.constant dense<0.000000e+00> : vector<16xf32>
    %33 = vector.multi_reduction <add>, %32, %cst_18 [1] : vector<16x8xf32> to vector<16xf32>
    %34 = vector.shape_cast %33 : vector<16xf32> to vector<16x1xf32>
    %35 = arith.mulf %4, %7 : vector<16x1xf32>
    %36 = arith.mulf %35, %7 : vector<16x1xf32>
    %cst_19 = arith.constant 2.000000e+00 : f32
    %37 = vector.broadcast %cst_19 : f32 to vector<16x1xf32>
    %38 = arith.mulf %37, %17 : vector<16x1xf32>
    %39 = arith.subf %36, %38 : vector<16x1xf32>
    %40 = arith.addf %39, %34 : vector<16x1xf32>
    %c16_i32 = arith.constant 16 : i32
    %41 = arith.muli %arg2, %c16_i32 : i32
    %42 = tpu.iota {dimensions = array<i32: 0>} : vector<16x1xi32>
    %43 = vector.broadcast %41 : i32 to vector<16x1xi32>
    %44 = arith.addi %43, %42 : vector<16x1xi32>
    %c16_i32_20 = arith.constant 16 : i32
    %45 = vector.broadcast %c16_i32_20 : i32 to vector<16x1xi32>
    %46 = arith.cmpi slt, %44, %45 : vector<16x1xi32>
    %cst_21 = arith.constant 0.000000e+00 : f32
    %47 = vector.broadcast %cst_21 : f32 to vector<16x1xf32>
    %48 = arith.select %46, %40, %47 : vector<16x1xi1>, vector<16x1xf32>
    %49 = vector.shape_cast %48 : vector<16x1xf32> to vector<1x16x1xf32>
    %cst_22 = arith.constant dense<0.000000e+00> : vector<1xf32>
    %50 = vector.multi_reduction <add>, %49, %cst_22 [1, 2] : vector<1x16x1xf32> to vector<1xf32>
    %51 = vector.shape_cast %50 : vector<1xf32> to vector<1x1x1xf32>
    %52 = vector.extract %51[0, 0, 0] : f32 from vector<1x1x1xf32>
    %c0_i32 = arith.constant 0 : i32
    %53 = arith.cmpi eq, %arg2, %c0_i32 : i32
    %54 = arith.extui %53 : i1 to i32
    %c0_i32_23 = arith.constant 0 : i32
    %55 = arith.cmpi ne, %54, %c0_i32_23 : i32
    scf.if %55 {
      %cst_32 = arith.constant 0.000000e+00 : f32
      %60 = vector.broadcast %cst_32 : f32 to vector<1x1x1x128xf32>
      %c0_33 = arith.constant 0 : index
      %c0_34 = arith.constant 0 : index
      %c0_35 = arith.constant 0 : index
      %c0_36 = arith.constant 0 : index
      %61 = vector.load %arg7[%c0_33, %c0_34, %c0_35, %c0_36] : memref<1x1x1x128xf32, #tpu.memory_space<vmem>>, vector<1x1x1x128xf32>
      tpu.vector_store %arg7[%c0_33, %c0_34, %c0_35, %c0_36], %60 {strides = array<i32>} : memref<1x1x1x128xf32, #tpu.memory_space<vmem>>, vector<1x1x1x128xf32>,
    } else {
    }
    %c0_24 = arith.constant 0 : index
    %c0_25 = arith.constant 0 : index
    %c0_26 = arith.constant 0 : index
    %c0_27 = arith.constant 0 : index
    %56 = vector.load %arg7[%c0_24, %c0_25, %c0_26, %c0_27] : memref<1x1x1x128xf32, #tpu.memory_space<vmem>>, vector<1x1x1x128xf32>
    %57 = vector.broadcast %52 : f32 to vector<1x1x1x128xf32>
    %58 = arith.addf %56, %57 : vector<1x1x1x128xf32>
    %c0_28 = arith.constant 0 : index
    %c0_29 = arith.constant 0 : index
    %c0_30 = arith.constant 0 : index
    %c0_31 = arith.constant 0 : index
    %59 = vector.load %arg7[%c0_28, %c0_29, %c0_30, %c0_31] : memref<1x1x1x128xf32, #tpu.memory_space<vmem>>, vector<1x1x1x128xf32>
    tpu.vector_store %arg7[%c0_28, %c0_29, %c0_30, %c0_31], %58 {strides = array<i32>} : memref<1x1x1x128xf32, #tpu.memory_space<vmem>>, vector<1x1x1x128xf32>,
    return
  }
  func.func @transform_0(%arg0: i32, %arg1: i32, %arg2: i32) -> (i32, i32, i32, i32) {
    %c0_i32 = arith.constant 0 : i32
    %c0_i32_0 = arith.constant 0 : i32
    return %arg0, %arg1, %arg2, %c0_i32 : i32, i32, i32, i32
  }
  func.func @transform_1(%arg0: i32, %arg1: i32, %arg2: i32) -> (i32, i32, i32) {
    %c0_i32 = arith.constant 0 : i32
    %c0_i32_0 = arith.constant 0 : i32
    %c0_i32_1 = arith.constant 0 : i32
    return %arg1, %c0_i32, %c0_i32_0 : i32, i32, i32
  }
  func.func @transform_2(%arg0: i32, %arg1: i32, %arg2: i32) -> (i32, i32, i32) {
    %c0_i32 = arith.constant 0 : i32
    %c0_i32_0 = arith.constant 0 : i32
    %c0_i32_1 = arith.constant 0 : i32
    return %arg1, %c0_i32, %c0_i32_0 : i32, i32, i32
  }
  func.func @transform_3(%arg0: i32, %arg1: i32, %arg2: i32) -> (i32, i32, i32, i32) {
    %c0_i32 = arith.constant 0 : i32
    %c0_i32_0 = arith.constant 0 : i32
    return %arg0, %arg1, %arg2, %c0_i32 : i32, i32, i32, i32
  }
  func.func @transform_4(%arg0: i32, %arg1: i32, %arg2: i32) -> (i32, i32, i32, i32) {
    %c0_i32 = arith.constant 0 : i32
    %c0_i32_0 = arith.constant 0 : i32
    %c0_i32_1 = arith.constant 0 : i32
    return %arg0, %arg1, %c0_i32, %c0_i32_0 : i32, i32, i32, i32
  }
}

</mosaic_0001>

<llo_original>
// kernel: tpu_custom_call.1
$region0: #{tpu_custom_call.1}
  #allocation0 [shape = 'u32[]', space=smem, size = 0x4, offset = 0x4, fixed_abs, tag = 'smem constant byte address 0x4 - core index']
  #allocation1 [shape = 'u32[72,128]{1,0:T(1,128)}', space=vmem, size = 0x9000, scoped, tag = 'internal scratch']
  %s0 = inlined_call_operand.vmem [shape: f32[2,4,16,32], index: 0, kind: input, shape index: {}]
  %s1 = inlined_call_operand.vmem [shape: f32[4,32,8], index: 1, kind: input, shape index: {}]
  %s2 = inlined_call_operand.vmem [shape: f32[4,1,8], index: 2, kind: input, shape index: {}]
  %s3 = inlined_call_operand.vmem [shape: f32[2,4,16,8], index: 3, kind: output, shape index: {0}]
  %s4 = inlined_call_operand.hbm [shape: f32[2,4,1,128], index: 4, kind: output, shape index: {1}]
  %5 = xla_tuple %s3, %s4
  %s6 = sld [smem:[#allocation0]]
  $region57: #{tpu_custom_call.1} parent=0
    _
  %s8 = ssub.s32 1, %s6
  %s9 = scalar_select 0, %s8, %s6
  $region1: #{tpu_custom_call.1} parent=0
    #allocation2 [shape = 'u8[1024]{0}', space=vmem, size = 0x400, scoped, tag = 'output window, operand 1']
    #allocation3 [shape = 's32[2]{0}', space=sflag, size = 0x8, scoped, tag = 'scoped memory for tpu_custom_call.1']
    %10 = vsyncpa [#allocation3], 0
    %s11 = scalar_lea.sflag [#allocation3], 1
    %12 = vsyncpa %s11, 0
    loop: start=0, step=1, limit=10
    $region2: #{tpu_custom_call.1} parent=1 // loop_pre_header
      _
    $region3: #{tpu_custom_call.1} parent=1 // loop_header
      %s14 = sphi 0, %s18
      %p15 = scmp.ge.s32.totalorder %s14, 10
      %s21 = sphi 0, %s40
      %s22 = sphi 0, %s36
      %s23 = sphi 0, %s32
      %s24 = sphi 0, %s21
      %s25 = sphi 0, %s22
      %s26 = sphi 0, %s23
      %s27 = sphi 0, %s24
      %s28 = sphi 0, %s25
      %s29 = sphi 0, %s26
      %s47 = sphi 0, %s49
      %s50 = sphi 0, %s47
      %s51 = sphi 0, %s50
      %s67 = sphi 0, %s51
      %s73 = sphi 0, %s75
      %s76 = sphi 0, %s73
      %s77 = sphi 0, %s76
      %s93 = sphi 0, %s77
      %s99 = sphi 0, %s101
      %s102 = sphi 0, %s99
      %s103 = sphi 0, %s102
      %s119 = sphi 0, %s103
      %s129 = sphi 0, %s131
      %s132 = sphi 0, %s129
      %s133 = sphi 0, %s132
      %s149 = sphi 0, %s133
      %s157 = sphi 0, %s159
      %s160 = sphi 0, %s157
      %s161 = sphi 0, %s160
      %s177 = sphi 0, %s161
    $region4: #{tpu_custom_call.1} parent=1 // loop_header_branch
      %17 = sbr.rel (%p15) target = $region8
    $region5: #{tpu_custom_call.1} parent=1 // loop_body
      %s19 = ssub.s32 %s14, 1
      %s20 = ssub.s32 %s14, 2
      %s30 = sadd.s32 1, %s23
      %p31 = scmp.ge.s32.totalorder %s30, 1
      %s32 = scalar_select %p31, 0, %s30
      %s33 = sadd.s32 1, %s22
      %s34 = scalar_select %p31, %s33, %s22
      %p35 = scmp.ge.s32.totalorder %s34, 4
      %s36 = scalar_select %p35, 0, %s34
      %s37 = sadd.s32 1, %s21
      %s38 = scalar_select %p35, %s37, %s21
      %p39 = scmp.ge.s32.totalorder %s38, 2
      %s40 = scalar_select %p39, 0, %s38
      %s41 = ssub.s32 %s21, %s40
      %s42 = ssub.s32 %s22, %s36
      %s43 = sor.u32 %s41, %s42
      %s44 = ssub.s32 %s23, %s32
      %s45 = sor.u32 %s43, %s44
      %p46 = scmp.eq.s32.totalorder %s45, 0
      %s48 = sadd.s32 %s47, 1
      %s49 = scalar_select %p46, %s47, %s48
      %p52 = pneg %p46
      %p53 = scmp.eq.s32.totalorder %s14, 7
      %p54 = por %p52, %p53
      %p55 = scmp.ne.s32.totalorder %s47, %s50
      %p56 = scmp.eq.s32.totalorder %s14, 0
      %p57 = por %p55, %p56
      %p58 = scmp.ne.s32.totalorder %s47, %s50
      %p59 = scmp.eq.s32.totalorder %s19, 7
      %p60 = por %p58, %p59
      %p61 = scmp.ne.s32.totalorder %s50, %s51
      %p62 = scmp.eq.s32.totalorder %s19, 0
      %p63 = por %p61, %p62
      %p64 = scmp.ne.s32.totalorder %s50, %s51
      %p65 = scmp.eq.s32.totalorder %s20, 7
      %p66 = por %p64, %p65
      %p68 = scmp.ne.s32.totalorder %s51, %s67
      %p69 = scmp.eq.s32.totalorder %s20, 0
      %p70 = por %p68, %p69
      %s71 = ssub.s32 %s22, %s36
      %p72 = scmp.eq.s32.totalorder %s71, 0
      %s74 = sadd.s32 %s73, 1
      %s75 = scalar_select %p72, %s73, %s74
      %p78 = pneg %p72
      %p79 = scmp.eq.s32.totalorder %s14, 7
      %p80 = por %p78, %p79
      %p81 = scmp.ne.s32.totalorder %s73, %s76
      %p82 = scmp.eq.s32.totalorder %s14, 0
      %p83 = por %p81, %p82
      %p84 = scmp.ne.s32.totalorder %s73, %s76
      %p85 = scmp.eq.s32.totalorder %s19, 7
      %p86 = por %p84, %p85
      %p87 = scmp.ne.s32.totalorder %s76, %s77
      %p88 = scmp.eq.s32.totalorder %s19, 0
      %p89 = por %p87, %p88
      %p90 = scmp.ne.s32.totalorder %s76, %s77
      %p91 = scmp.eq.s32.totalorder %s20, 7
      %p92 = por %p90, %p91
      %p94 = scmp.ne.s32.totalorder %s77, %s93
      %p95 = scmp.eq.s32.totalorder %s20, 0
      %p96 = por %p94, %p95
      %s97 = ssub.s32 %s22, %s36
      %p98 = scmp.eq.s32.totalorder %s97, 0
      %s100 = sadd.s32 %s99, 1
      %s101 = scalar_select %p98, %s99, %s100
      %p104 = pneg %p98
      %p105 = scmp.eq.s32.totalorder %s14, 7
      %p106 = por %p104, %p105
      %p107 = scmp.ne.s32.totalorder %s99, %s102
      %p108 = scmp.eq.s32.totalorder %s14, 0
      %p109 = por %p107, %p108
      %p110 = scmp.ne.s32.totalorder %s99, %s102
      %p111 = scmp.eq.s32.totalorder %s19, 7
      %p112 = por %p110, %p111
      %p113 = scmp.ne.s32.totalorder %s102, %s103
      %p114 = scmp.eq.s32.totalorder %s19, 0
      %p115 = por %p113, %p114
      %p116 = scmp.ne.s32.totalorder %s102, %s103
      %p117 = scmp.eq.s32.totalorder %s20, 7
      %p118 = por %p116, %p117
      %p120 = scmp.ne.s32.totalorder %s103, %s119
      %p121 = scmp.eq.s32.totalorder %s20, 0
      %p122 = por %p120, %p121
      %s123 = ssub.s32 %s21, %s40
      %s124 = ssub.s32 %s22, %s36
      %s125 = sor.u32 %s123, %s124
      %s126 = ssub.s32 %s23, %s32
      %s127 = sor.u32 %s125, %s126
      %p128 = scmp.eq.s32.totalorder %s127, 0
      %s130 = sadd.s32 %s129, 1
      %s131 = scalar_select %p128, %s129, %s130
      %p134 = pneg %p128
      %p135 = scmp.eq.s32.totalorder %s14, 7
      %p136 = por %p134, %p135
      %p137 = scmp.ne.s32.totalorder %s129, %s132
      %p138 = scmp.eq.s32.totalorder %s14, 0
      %p139 = por %p137, %p138
      %p140 = scmp.ne.s32.totalorder %s129, %s132
      %p141 = scmp.eq.s32.totalorder %s19, 7
      %p142 = por %p140, %p141
      %p143 = scmp.ne.s32.totalorder %s132, %s133
      %p144 = scmp.eq.s32.totalorder %s19, 0
      %p145 = por %p143, %p144
      %p146 = scmp.ne.s32.totalorder %s132, %s133
      %p147 = scmp.eq.s32.totalorder %s20, 7
      %p148 = por %p146, %p147
      %p150 = scmp.ne.s32.totalorder %s133, %s149
      %p151 = scmp.eq.s32.totalorder %s20, 0
      %p152 = por %p150, %p151
      %s153 = ssub.s32 %s21, %s40
      %s154 = ssub.s32 %s22, %s36
      %s155 = sor.u32 %s153, %s154
      %p156 = scmp.eq.s32.totalorder %s155, 0
      %s158 = sadd.s32 %s157, 1
      %s159 = scalar_select %p156, %s157, %s158
      %p162 = pneg %p156
      %p163 = scmp.eq.s32.totalorder %s14, 7
      %p164 = por %p162, %p163
      %p165 = scmp.ne.s32.totalorder %s157, %s160
      %p166 = scmp.eq.s32.totalorder %s14, 0
      %p167 = por %p165, %p166
      %p168 = scmp.ne.s32.totalorder %s157, %s160
      %p169 = scmp.eq.s32.totalorder %s19, 7
      %p170 = por %p168, %p169
      %p171 = scmp.ne.s32.totalorder %s160, %s161
      %p172 = scmp.eq.s32.totalorder %s19, 0
      %p173 = por %p171, %p172
      %p174 = scmp.ne.s32.totalorder %s160, %s161
      %p175 = scmp.eq.s32.totalorder %s20, 7
      %p176 = por %p174, %p175
      %p178 = scmp.ne.s32.totalorder %s161, %s177
      %p179 = scmp.eq.s32.totalorder %s20, 0
      %p180 = por %p178, %p179
      %p181 = scmp.le.s32.totalorder 1, %s14
      %p182 = scmp.lt.s32.totalorder %s14, 9
      %p183 = pnand %p181, %p182
      %p184 = pneg %p183
      // Predicated region
      $region9: #{tpu_custom_call.1} parent=5 // pred_check
        _
      $region10: #{tpu_custom_call.1} parent=5 // pred_check_branch
        %186 = sbr.rel (%p183) target = $region12
      $region11: #{tpu_custom_call.1} parent=5 // pred_region
        %s187 = ssub.s32 %s14, 1
      $region12: #{tpu_custom_call.1} parent=5 // pred_fallthru
        _
      %p188 = scmp.lt.s32.totalorder %s14, 8
      // Predicated region
      $region13: #{tpu_custom_call.1} parent=5 // pred_check
        %p189 = pneg %p188
      $region14: #{tpu_custom_call.1} parent=5 // pred_check_branch
        %191 = sbr.rel (%p189) target = $region16
      $region15: #{tpu_custom_call.1} parent=5 // pred_region
        // Predicated region
        $region17: #{tpu_custom_call.1} parent=15 // pred_check
          %p192 = pneg %p57
        $region18: #{tpu_custom_call.1} parent=15 // pred_check_branch
          %194 = sbr.rel (%p192) target = $region20
        $region19: #{tpu_custom_call.1} parent=15 // pred_region
          %s195 = smul.u32 2, %s23
          %p196 = scmp.lt.s32.totalorder %s21, 1
          %s197 = scalar_select %p196, %s21, 1
          %p198 = scmp.lt.s32.totalorder %s22, 3
          %s199 = scalar_select %p198, %s22, 3
          %p200 = scmp.lt.s32.totalorder %s195, 1
          %s201 = scalar_select %p200, %s195, 1
          %s202 = smul.addr %s199, 2
          %s203 = sadd.s32 %s201, %s202
          %s204 = smul.addr %s197, 8
          %s205 = sadd.s32 %s203, %s204
          %s206 = smul.addr %s205, 8
          %s207 = scalar_lea.vmem %s0, %s206
          %s208 = smul.u32 2, %s23
        $region20: #{tpu_custom_call.1} parent=15 // pred_fallthru
          _
        // Predicated region
        $region21: #{tpu_custom_call.1} parent=15 // pred_check
          %p209 = pneg %p83
        $region22: #{tpu_custom_call.1} parent=15 // pred_check_branch
          %211 = sbr.rel (%p209) target = $region24
        $region23: #{tpu_custom_call.1} parent=15 // pred_region
          %p212 = scmp.lt.s32.totalorder %s22, 3
          %s213 = scalar_select %p212, %s22, 3
          %s214 = smul.addr %s213, 4
          %s215 = smul.addr %s214, 8
          %s216 = scalar_lea.vmem %s1, %s215
        $region24: #{tpu_custom_call.1} parent=15 // pred_fallthru
          _
        // Predicated region
        $region25: #{tpu_custom_call.1} parent=15 // pred_check
          %p217 = pneg %p109
        $region26: #{tpu_custom_call.1} parent=15 // pred_check_branch
          %219 = sbr.rel (%p217) target = $region28
        $region27: #{tpu_custom_call.1} parent=15 // pred_region
          %p220 = scmp.lt.s32.totalorder %s22, 3
          %s221 = scalar_select %p220, %s22, 3
          %s222 = scalar_lea.vmem %s2, %s221
        $region28: #{tpu_custom_call.1} parent=15 // pred_fallthru
          _
      $region16: #{tpu_custom_call.1} parent=5 // pred_fallthru
        _
      %p223 = scmp.le.s32.totalorder 1, %s14
      %p224 = scmp.lt.s32.totalorder %s14, 9
      %p225 = pnand %p223, %p224
      %p226 = pneg %p225
      // Predicated region
      $region29: #{tpu_custom_call.1} parent=5 // pred_check
        _
      $region30: #{tpu_custom_call.1} parent=5 // pred_check_branch
        %228 = sbr.rel (%p225) target = $region32
      $region31: #{tpu_custom_call.1} parent=5 // pred_region
        %s229 = ssub.s32 %s14, 1
        %s230 = smul.u32 2, %s26
        %p231 = scmp.lt.s32.totalorder %s24, 1
        %s232 = scalar_select %p231, %s24, 1
        %p233 = scmp.lt.s32.totalorder %s25, 3
        %s234 = scalar_select %p233, %s25, 3
        %p235 = scmp.lt.s32.totalorder %s230, 1
        %s236 = scalar_select %p235, %s230, 1
        %s237 = smul.addr %s234, 2
        %s238 = sadd.s32 %s236, %s237
        %s239 = smul.addr %s232, 8
        %s240 = sadd.s32 %s238, %s239
        %s241 = smul.addr %s240, 8
        %s242 = scalar_lea.vmem %s0, %s241
        %p243 = pneg %p63
        %p244 = pneg %p60
        %p245 = scmp.lt.s32.totalorder %s25, 3
        %s246 = scalar_select %p245, %s25, 3
        %s247 = smul.addr %s246, 4
        %s248 = smul.addr %s247, 8
        %s249 = scalar_lea.vmem %s1, %s248
        %p250 = pneg %p89
        %p251 = pneg %p86
        %p252 = scmp.lt.s32.totalorder %s25, 3
        %s253 = scalar_select %p252, %s25, 3
        %s254 = scalar_lea.vmem %s2, %s253
        %p255 = pneg %p115
        %p256 = pneg %p112
        %p257 = pneg %p145
        %p258 = pneg %p142
        %s259 = smul.u32 2, %s26
        %p260 = scmp.lt.s32.totalorder %s24, 1
        %s261 = scalar_select %p260, %s24, 1
        %p262 = scmp.lt.s32.totalorder %s25, 3
        %s263 = scalar_select %p262, %s25, 3
        %p264 = scmp.lt.s32.totalorder %s259, 1
        %s265 = scalar_select %p264, %s259, 1
        %s266 = smul.addr %s263, 2
        %s267 = sadd.s32 %s265, %s266
        %s268 = smul.addr %s261, 8
        %s269 = sadd.s32 %s267, %s268
        %s270 = smul.addr %s269, 8
        %s271 = scalar_lea.vmem %s3, %s270
        %p272 = pneg %p173
        %p273 = pneg %p170
        %s274 = sand.u32 %s160, 1
        %s275 = scalar_lea.sflag [#allocation3], %s274
        %s276 = sand.u32 %s160, 1
        %s277 = scalar_lea.vmem [#allocation2], %s276
        %s278 = smul.u32 2, %s26
        %p279 = scmp.lt.s32.totalorder %s24, 1
        %s280 = scalar_select %p279, %s24, 1
        %p281 = scmp.lt.s32.totalorder %s25, 3
        %s282 = scalar_select %p281, %s25, 3
        %p283 = scmp.lt.s32.totalorder %s278, 1
        %s284 = scalar_select %p283, %s278, 1
        %s285 = smul.addr %s282, 2
        %s286 = sadd.s32 %s284, %s285
        %s287 = smul.addr %s280, 8
        %s288 = sadd.s32 %s286, %s287
        %s289 = smul.addr %s288, 8
        %s290 = scalar_lea.vmem %s0, %s289
        %s291 = smul.u32 2, %s26
        %p292 = scmp.lt.s32.totalorder %s25, 3
        %s293 = scalar_select %p292, %s25, 3
        %s294 = smul.addr %s293, 4
        %s295 = smul.addr %s294, 8
        %s296 = scalar_lea.vmem %s1, %s295
        %p297 = scmp.lt.s32.totalorder %s25, 3
        %s298 = scalar_select %p297, %s25, 3
        %s299 = scalar_lea.vmem %s2, %s298
        %s300 = smul.u32 2, %s26
        %p301 = scmp.lt.s32.totalorder %s24, 1
        %s302 = scalar_select %p301, %s24, 1
        %p303 = scmp.lt.s32.totalorder %s25, 3
        %s304 = scalar_select %p303, %s25, 3
        %p305 = scmp.lt.s32.totalorder %s300, 1
        %s306 = scalar_select %p305, %s300, 1
        %s307 = smul.addr %s304, 2
        %s308 = sadd.s32 %s306, %s307
        %s309 = smul.addr %s302, 8
        %s310 = sadd.s32 %s308, %s309
        %s311 = smul.addr %s310, 8
        %s312 = scalar_lea.vmem %s3, %s311
        %s313 = smul.u32 2, %s26
        %v314 = vld [vmem:[%s290] sm:$0xff]
        %v315 = vld [vmem:[%s290 + $0x8] sm:$0xff]
        %v316 = vmul.f32 %v314, %v314
        %v317 = vmul.f32 %v315, %v315
        %vm318 = vcmask 261120
        %v319 = vsel %vm318, %v316, 0.0
        %320 = vadd.xlane.f32.xlu0 %v319
        %v321 = vpop.xlane.xlu0 %320
        %v322 = vsel %vm318, %v317, 0.0
        %323 = vadd.xlane.f32.xlu0 %v322
        %v324 = vpop.xlane.xlu0 %323
        %v325 = vmax.f32 %v321, 1e-24
        %v326 = vmax.f32 %v324, 1e-24
        %v327 = vrsqrt.pop %v325
        %v328 = vmul.f32 %v327, %v325
        %v329 = vmul.f32 %v328, %v327
        %v330 = vmul.f32 0.5, %v329
        %v331 = vsub.f32 1.5, %v330
        %v332 = vmul.f32 %v327, %v331
        %vm333 = vweird.f32 %v325
        %vm334 = vweird.f32 %v327
        %vm335 = vmor %vm333, %vm334
        %v336 = vsel %vm335, %v327, %v332
        %v337 = vrsqrt.pop %v326
        %v338 = vmul.f32 %v337, %v326
        %v339 = vmul.f32 %v338, %v337
        %v340 = vmul.f32 0.5, %v339
        %v341 = vsub.f32 1.5, %v340
        %v342 = vmul.f32 %v337, %v341
        %vm343 = vweird.f32 %v326
        %vm344 = vweird.f32 %v337
        %vm345 = vmor %vm343, %vm344
        %v346 = vsel %vm345, %v337, %v342
        %v347 = vmul.f32 %v314, %v336
        %v348 = vmul.f32 %v315, %v346
        %v349 = vld [vmem:[%s296] sm:$0xff]
        %v350 = vld [vmem:[%s296 + $0x8] sm:$0xff]
        %v351 = vld [vmem:[%s296 + $0x10] sm:$0xff]
        %v352 = vld [vmem:[%s296 + $0x18] sm:$0xff]
        %v354 = vsel %vm318, %v347, 0
        %v357 = vsel %vm318, %v348, 0
        %359 = vmatpush.msra.mxu0 0.0
        %360 = vmatpush.msra.mxu0 0.0
        %361 = vmatpush.msra.mxu0 0.0
        %362 = vmatpush.msra.mxu0 0.0
        %363 = vmatpush.msra.mxu0 0.0
        %364 = vmatpush.msra.mxu0 0.0
        %365 = vmatpush.msra.mxu0 0.0
        %366 = vmatpush.msra.mxu0 0.0
        %367 = vmatpush.msra.mxu0 0.0
        %368 = vmatpush.msra.mxu0 0.0
        %369 = vmatpush.msra.mxu0 0.0
        %370 = vmatpush.msra.mxu0 0.0
        %371 = vmatpush.msra.mxu0 %v352
        %372 = vmatpush.msra.mxu0 %v351
        %373 = vmatpush.msra.mxu0 %v350
        %374 = vmatpush.msra.mxu0 %v349
        %375 = vmatmul.f32.gmra.mxu0 %v354
        %v376 = vpop.f32.mrf.mxu0
        %v377 = vadd.f32 0.0, %v376
        %378 = vmatmul.f32.gmra.mxu0 %v357
        %v379 = vpop.f32.mrf.mxu0
        %v380 = vadd.f32 0.0, %v379
        %381 = vdwg.mxu0
        %vm382 = vcmask 64512
        %383 = vst.msk [vmem:[%s312] sm:$0xff] %vm382, %v377
        %384 = vst.msk [vmem:[%s312 + $0x8] sm:$0xff] %vm382, %v380
        %v385 = vsel %vm382, %v377, -inf
        %386 = vmax.xlane.f32.xlu0 %v385
        %v387 = vpop.xlane.xlu0 %386
        %v388 = vsel %vm382, %v380, -inf
        %389 = vmax.xlane.f32.xlu0 %v388
        %v390 = vpop.xlane.xlu0 %389
        %v391 = vlaneseq
        %v392 = vand.u32 %v391, 127
        %vm393 = vcmp.ge.f32.partialorder %v377, %v387
        %vm394 = vcmp.ge.f32.partialorder %v380, %v390
        %v395 = vsel %vm393, %v392, 8
        %v396 = vsel %vm394, %v392, 8
        %v397 = vsel %vm382, %v395, 2147483647
        %v398 = vand.u32 %v397, 65535
        %v399 = vshra.s32 %v397, 16
        %v400 = vcvt.s32.f32 %v398
        %v401 = vcvt.s32.f32 %v399
        %402 = vmin.xlane.f32.xlu0 %v401
        %v403 = vpop.xlane.xlu0 %402
        %vm404 = vcmp.eq.f32.partialorder %v401, %v403
        %v405 = vsel %vm404, %v400, inf
        %406 = vmin.xlane.f32.xlu0 %v405
        %v407 = vpop.xlane.xlu0 %406
        %v408 = vcvt.f32.s32 %v407
        %v409 = vcvt.f32.s32 %v403
        %v410 = vshll.u32 %v409, 16
        %v411 = vadd.s32 %v410, %v408
        %v412 = vsel %vm382, %v396, 2147483647
        %v413 = vand.u32 %v412, 65535
        %v414 = vshra.s32 %v412, 16
        %v415 = vcvt.s32.f32 %v413
        %v416 = vcvt.s32.f32 %v414
        %417 = vmin.xlane.f32.xlu0 %v416
        %v418 = vpop.xlane.xlu0 %417
        %vm419 = vcmp.eq.f32.partialorder %v416, %v418
        %v420 = vsel %vm419, %v415, inf
        %421 = vmin.xlane.f32.xlu0 %v420
        %v422 = vpop.xlane.xlu0 %421
        %v423 = vcvt.f32.s32 %v422
        %v424 = vcvt.f32.s32 %v418
        %v425 = vshll.u32 %v424, 16
        %v426 = vadd.s32 %v425, %v423
        %vm427 = vcmp.eq.s32.totalorder %v392, %v411
        %vm428 = vcmp.eq.s32.totalorder %v392, %v426
        %v429 = vld [vmem:[%s299] sm:$0x1]
        %v431 = vperm.slane %v429, 0
        %v433 = vsel %vm427, %v431, 0.0
        %v434 = vsel %vm428, %v431, 0.0
        %v435 = vsel %vm382, %v433, 0.0
        %436 = vadd.xlane.f32.xlu0 %v435
        %v437 = vpop.xlane.xlu0 %436
        %v438 = vsel %vm382, %v434, 0.0
        %439 = vadd.xlane.f32.xlu0 %v438
        %v440 = vpop.xlane.xlu0 %439
        %v441 = vmul.f32 %v321, %v336
        %v442 = vmul.f32 %v324, %v346
        %v443 = vmul.f32 %v441, %v336
        %v444 = vmul.f32 %v442, %v346
        %v445 = vmul.f32 %v387, 2.0
        %v446 = vmul.f32 %v390, 2.0
        %v447 = vsub.f32 %v443, %v445
        %v448 = vsub.f32 %v444, %v446
        %v449 = vadd.f32 %v447, %v437
        %v450 = vadd.f32 %v448, %v440
        %s451 = smul.u32 %s26, 16
        %v452 = vlaneseq
        %v453 = vshrl.u32 %v452, 7
        %v454 = vadd.s32 %v453, 8
        %v455 = vstv %s451
        %v456 = vadd.s32 %v455, %v453
        %v457 = vadd.s32 %v455, %v454
        %vm458 = vcmp.lt.s32.totalorder %v456, 16
        %vm459 = vcmp.lt.s32.totalorder %v457, 16
        %v460 = vsel %vm458, %v449, 0.0
        %v461 = vsel %vm459, %v450, 0.0
        %vm462 = vcmask 7168
        %v463 = vsel %vm462, %v460, 0.0
        %v464 = vsel %vm462, %v461, 0.0
        %v465 = vadd.f32 %v463, %v464
        %466 = vadd.xlane.f32.xlu0 %v465
        %v467 = vpop.xlane.xlu0 %466
        %v468 = vrot.slane %v467, 4
        %v469 = vadd.f32 %v467, %v468
        %v470 = vrot.slane %v469, 2
        %v471 = vadd.f32 %v469, %v470
        %v472 = vrot.slane %v471, 1
        %v473 = vadd.f32 %v471, %v472
        %s474 = vtos %v473
        %p475 = scmp.eq.s32.totalorder %s26, 0
        // Predicated region
        $region33: #{tpu_custom_call.1} parent=31 // pred_check
          %p476 = pneg %p475
        $region34: #{tpu_custom_call.1} parent=31 // pred_check_branch
          %478 = sbr.rel (%p476) target = $region36
        $region35: #{tpu_custom_call.1} parent=31 // pred_region
          %479 = vst [vmem:[%s277] sm:$0x1] 0.0
        $region36: #{tpu_custom_call.1} parent=31 // pred_fallthru
          _
        %v480 = vld [vmem:[%s277] sm:$0x1]
        %v481 = vstv %s474
        %v482 = vadd.f32 %v480, %v481
        %483 = vst [vmem:[%s277] sm:$0x1] %v482
        %s484 = smul.u32 2, %s26
        %p485 = scmp.lt.s32.totalorder %s24, 1
        %s486 = scalar_select %p485, %s24, 1
        %p487 = scmp.lt.s32.totalorder %s25, 3
        %s488 = scalar_select %p487, %s25, 3
        %p489 = scmp.lt.s32.totalorder %s484, 1
        %s490 = scalar_select %p489, %s484, 1
        %s491 = smul.addr %s488, 2
        %s492 = sadd.s32 %s490, %s491
        %s493 = smul.addr %s486, 8
        %s494 = sadd.s32 %s492, %s493
        %s495 = smul.addr %s494, 8
        %s496 = scalar_lea.vmem %s3, %s495
        %s497 = sand.u32 %s160, 1
        %s498 = scalar_lea.sflag [#allocation3], %s497
        %s499 = sand.u32 %s160, 1
        %s500 = scalar_lea.vmem [#allocation2], %s499
        // Predicated region
        $region37: #{tpu_custom_call.1} parent=31 // pred_check
          %p501 = pneg %p142
        $region38: #{tpu_custom_call.1} parent=31 // pred_check_branch
          %503 = sbr.rel (%p501) target = $region40
        $region39: #{tpu_custom_call.1} parent=31 // pred_region
          %s504 = smul.u32 2, %s26
        $region40: #{tpu_custom_call.1} parent=31 // pred_fallthru
          _
        // Predicated region
        $region41: #{tpu_custom_call.1} parent=31 // pred_check
          %p505 = pneg %p170
        $region42: #{tpu_custom_call.1} parent=31 // pred_check_branch
          %507 = sbr.rel (%p505) target = $region44
        $region43: #{tpu_custom_call.1} parent=31 // pred_region
          %509 = vsyncadd %s498, 0
          %s510 = smul.addr %s24, 4
          %s511 = sadd.s32 %s25, %s510
          %s512 = scalar_lea.hbm %s4, %s511
          %s514 = sshll.u32 %s500, 4
          %s515 = int_to_ptr.vmem [resolvable:$true] %s514
          %s516 = sshll.u32 %s512, 4
          %s517 = int_to_ptr.hbm [resolvable:$true] %s516
          %519 = dma.vmem_to_hbm [thread:$0]  %s515, 16, %s517, %s498
        $region44: #{tpu_custom_call.1} parent=31 // pred_fallthru
          _
      $region32: #{tpu_custom_call.1} parent=5 // pred_fallthru
        _
      %p520 = scmp.le.s32.totalorder 2, %s14
      // Predicated region
      $region45: #{tpu_custom_call.1} parent=5 // pred_check
        %p521 = pneg %p520
      $region46: #{tpu_custom_call.1} parent=5 // pred_check_branch
        %523 = sbr.rel (%p521) target = $region48
      $region47: #{tpu_custom_call.1} parent=5 // pred_region
        %s524 = ssub.s32 %s14, 2
        // Predicated region
        $region49: #{tpu_custom_call.1} parent=47 // pred_check
          %p525 = pneg %p148
        $region50: #{tpu_custom_call.1} parent=47 // pred_check_branch
          %527 = sbr.rel (%p525) target = $region52
        $region51: #{tpu_custom_call.1} parent=47 // pred_region
          %s528 = smul.u32 2, %s29
          %p529 = scmp.lt.s32.totalorder %s27, 1
          %s530 = scalar_select %p529, %s27, 1
          %p531 = scmp.lt.s32.totalorder %s28, 3
          %s532 = scalar_select %p531, %s28, 3
          %p533 = scmp.lt.s32.totalorder %s528, 1
          %s534 = scalar_select %p533, %s528, 1
          %s535 = smul.addr %s532, 2
          %s536 = sadd.s32 %s534, %s535
          %s537 = smul.addr %s530, 8
          %s538 = sadd.s32 %s536, %s537
          %s539 = smul.addr %s538, 8
          %s540 = scalar_lea.vmem %s3, %s539
        $region52: #{tpu_custom_call.1} parent=47 // pred_fallthru
          _
        // Predicated region
        $region53: #{tpu_custom_call.1} parent=47 // pred_check
          %p541 = pneg %p176
        $region54: #{tpu_custom_call.1} parent=47 // pred_check_branch
          %543 = sbr.rel (%p541) target = $region56
        $region55: #{tpu_custom_call.1} parent=47 // pred_region
          %s544 = sand.u32 %s161, 1
          %s545 = scalar_lea.sflag [#allocation3], %s544
          %s546 = sand.u32 %s161, 1
          %s547 = scalar_lea.vmem [#allocation2], %s546
          %549 = dma.done %s545, 16
        $region56: #{tpu_custom_call.1} parent=47 // pred_fallthru
          _
      $region48: #{tpu_custom_call.1} parent=5 // pred_fallthru
        _
    $region6: #{tpu_custom_call.1} parent=1 // loop_footer
      %s18 = sadd.s32 1, %s14
    $region7: #{tpu_custom_call.1} parent=1 // loop_footer_branch
      %13 = sbr.rel target = $region3
    $region8: #{tpu_custom_call.1} parent=1 // loop_exit
      _
    %550 = vsyncpa [#allocation3], 1
    %s551 = scalar_lea.sflag [#allocation3], 1
    %552 = vsyncpa %s551, 1

</llo_original>
